<compile_context>
chip_gen: v6e
topology: v6e:2x2x1
jax: 0.10.0
libtpu: 0.0.40
codegen_flags: <defaults>
</compile_context>

<pallas_src>
import jax
import jax.numpy as jnp
from jax import lax
from jax.experimental import pallas as pl
from jax.experimental.pallas import tpu as pltpu


def _round_up(n, m):
    return ((n + m - 1) // m) * m


def _r_predictor_kernel(x_ref, w1_ref, b1_ref, w2_ref, b2_ref, w3_ref, b3_ref,
                        o_ref):
    # x arrives as f32 and is cast to bf16 here (cheap VPU work) instead of a
    # separate XLA pad+convert pass over HBM in the wrapper.
    x_bf = x_ref[...].astype(jnp.bfloat16)

    # Layer 1: (tile, 256) @ (256, 256) on the MXU, f32 accumulation.
    h1 = jnp.dot(x_bf, w1_ref[...], preferred_element_type=jnp.float32)
    h1 = jnp.maximum(h1 + b1_ref[...], 0.0)

    # Layer 2: (tile, 256) @ (256, 512) on the MXU, f32 accumulation.
    h2 = jnp.dot(h1.astype(jnp.bfloat16), w2_ref[...],
                 preferred_element_type=jnp.float32)
    h2 = jnp.maximum(h2 + b2_ref[...], 0.0)

    # Layer 3: 512 -> 1 as VPU multiply + lane reduction (keeps the MXU free
    # for the real work above and already matches the (tile, 1) output block).
    logits = jnp.sum(h2 * w3_ref[...], axis=-1, keepdims=True) + b3_ref[0]

    o_ref[...] = jax.nn.sigmoid(logits).astype(o_ref.dtype)


def r_predictor_forward(x, w1, b1, w2, b2, w3, b3, *, tile_n=1024):
    N, D_in = x.shape
    assert D_in == 256
    if tile_n % 256 != 0 or tile_n < 256:
        raise ValueError("tile_n must be a multiple of 256 and >= 256")
    if N == 0:
        return jnp.zeros((0, 1), jnp.float32)

    # Tile selection:
    #  * N <= 512: one grid step, tile rounded to 16 (bf16 sublane packing).
    #  * N  > 512: at least two grid steps (both v7x TensorCores get work),
    #    tile a multiple of 256, capped at tile_n.  Ragged last tile is fine:
    #    Pallas clamps the boundary block's DMAs.
    if N <= 512:
        tile_eff = _round_up(N, 16)
    else:
        tile_eff = min(tile_n, _round_up(pl.cdiv(N, 2), 256))

    grid = (pl.cdiv(N, tile_eff),)

    # One-time tiny casts of the MXU operands; biases stay f32 as (1, dim)
    # rows, w3 stays f32 since layer 3 runs on the VPU.
    w1_bf = w1.astype(jnp.bfloat16)
    w2_bf = w2.astype(jnp.bfloat16)
    w3_row = w3.reshape(1, 512).astype(jnp.float32)
    b1_2d = b1.reshape(1, 256).astype(jnp.float32)
    b2_2d = b2.reshape(1, 512).astype(jnp.float32)
    b3_1d = b3.reshape(1).astype(jnp.float32)

    out = pl.pallas_call(
        _r_predictor_kernel,
        out_shape=jax.ShapeDtypeStruct((N, 1), jnp.float32),
        grid_spec=pltpu.PrefetchScalarGridSpec(
            num_scalar_prefetch=0,
            grid=grid,
            in_specs=[
                pl.BlockSpec((tile_eff, 256), lambda i: (i, 0)),  # x tile (f32)
                pl.BlockSpec((256, 256), lambda i: (0, 0)),       # w1 (resident)
                pl.BlockSpec((1, 256), lambda i: (0, 0)),         # b1
                pl.BlockSpec((256, 512), lambda i: (0, 0)),       # w2 (resident)
                pl.BlockSpec((1, 512), lambda i: (0, 0)),         # b2
                pl.BlockSpec((1, 512), lambda i: (0, 0)),         # w3 row (f32)
                pl.BlockSpec(memory_space=pltpu.SMEM),            # b3 scalar
            ],
            out_specs=pl.BlockSpec((tile_eff, 1), lambda i: (i, 0)),
        ),
        compiler_params=pltpu.CompilerParams(
            dimension_semantics=("parallel",),
            vmem_limit_bytes=32 * 1024 * 1024,
        ),
    )(x, w1_bf, b1_2d, w2_bf, b2_2d, w3_row, b3_1d)

    return out


def init_params(key):
    """Deterministic synthetic parameters matching R_Predictor's shapes."""
    k1, k2, k3, k4, k5, k6 = jax.random.split(key, 6)
    # Stored as (in, out); PyTorch stores (out, in) and does x @ W.T.
    w1 = jax.random.normal(k1, (256, 256), jnp.float32) * (1.0 / 16.0)
    b1 = jax.random.normal(k2, (256,), jnp.float32) * 0.01
    w2 = jax.random.normal(k3, (256, 512), jnp.float32) * (1.0 / 16.0)
    b2 = jax.random.normal(k4, (512,), jnp.float32) * 0.01
    w3 = jax.random.normal(k5, (512, 1), jnp.float32) * (1.0 / 22.6)
    b3 = jax.random.normal(k6, (1,), jnp.float32) * 0.01
    return w1, b1, w2, b2, w3, b3


def reference_forward(x, w1, b1, w2, b2, w3, b3):
    """Reference with the same bf16-operand / f32-accumulate numerics."""
    f32 = jnp.float32
    h1 = jax.nn.relu(
        jnp.dot(x.astype(jnp.bfloat16), w1.astype(jnp.bfloat16),
                preferred_element_type=f32) + b1)
    h2 = jax.nn.relu(
        jnp.dot(h1.astype(jnp.bfloat16), w2.astype(jnp.bfloat16),
                preferred_element_type=f32) + b2)
    logits = jnp.dot(h2, w3.astype(f32), preferred_element_type=f32,
                     precision=lax.Precision.HIGHEST) + b3
    return jax.nn.sigmoid(logits)


if __name__ == "__main__":
    key = jax.random.PRNGKey(0)
    kx, kx2, kp = jax.random.split(key, 3)
    params = init_params(kp)

    # Small batch of feature pairs: input dim = 128 + 128 = 256.
    N = 16
    x = jax.random.normal(kx, (N, 256), jnp.float32)
    out = jax.block_until_ready(r_predictor_forward(x, *params))
    ref = reference_forward(x, *params)
    assert out.shape == (N, 1)
    assert jnp.allclose(out, ref, atol=2e-3, rtol=2e-3), "mismatch (small N)"

    # Multi-tile path: >1 parallel grid step plus a ragged boundary block.
    N2 = 600
    x2 = jax.random.normal(kx2, (N2, 256), jnp.float32)
    out2 = jax.block_until_ready(r_predictor_forward(x2, *params))
    ref2 = reference_forward(x2, *params)
    assert out2.shape == (N2, 1)
    assert jnp.allclose(out2, ref2, atol=2e-3, rtol=2e-3), "mismatch (tiled N)"

    print("KERNEL_OK")
</pallas_src>

<mosaic_0001>
module attributes {stable_mosaic.version = 11 : i64} {
  func.func @_r_predictor_kernel(%arg0: i32, %arg1: memref<16x256xf32, #tpu.memory_space<vmem>>, %arg2: memref<256x256xbf16, #tpu.memory_space<vmem>>, %arg3: memref<1x256xf32, #tpu.memory_space<vmem>>, %arg4: memref<256x512xbf16, #tpu.memory_space<vmem>>, %arg5: memref<1x512xf32, #tpu.memory_space<vmem>>, %arg6: memref<1x512xf32, #tpu.memory_space<vmem>>, %arg7: memref<1xf32, #tpu.memory_space<smem>>, %arg8: memref<16x1xf32, #tpu.memory_space<vmem>>) attributes {dimension_semantics = [#tpu.dimension_semantics<parallel>], iteration_bounds = array<i64: 1>, scalar_prefetch = 0 : i64, scratch_operands = 0 : i64, tpu.core_type = #tpu.core_type<tc>, window_params = [{transform_indices = @transform_0, window_bounds = array<i64: 16, 256>}, {pipeline_mode = #tpu.pipeline_mode<synchronous>, transform_indices = @transform_1, window_bounds = array<i64: 256, 256>}, {pipeline_mode = #tpu.pipeline_mode<synchronous>, transform_indices = @transform_2, window_bounds = array<i64: 1, 256>}, {pipeline_mode = #tpu.pipeline_mode<synchronous>, transform_indices = @transform_3, window_bounds = array<i64: 256, 512>}, {pipeline_mode = #tpu.pipeline_mode<synchronous>, transform_indices = @transform_4, window_bounds = array<i64: 1, 512>}, {pipeline_mode = #tpu.pipeline_mode<synchronous>, transform_indices = @transform_5, window_bounds = array<i64: 1, 512>}, {transform_indices = @transform_6, window_bounds = array<i64: 1>}, {transform_indices = @transform_7, window_bounds = array<i64: 16, 1>}]} {
    %c0 = arith.constant 0 : index
    %c0_0 = arith.constant 0 : index
    %0 = vector.load %arg1[%c0, %c0_0] : memref<16x256xf32, #tpu.memory_space<vmem>>, vector<16x256xf32>
    %1 = arith.truncf %0 : vector<16x256xf32> to vector<16x256xbf16>
    %c0_1 = arith.constant 0 : index
    %c0_2 = arith.constant 0 : index
    %2 = vector.load %arg2[%c0_1, %c0_2] : memref<256x256xbf16, #tpu.memory_space<vmem>>, vector<256x256xbf16>
    %cst = arith.constant dense<0.000000e+00> : vector<16x256xf32>
    %3 = tpu.matmul %1, %2, %cst {dimension_numbers = #tpu.dot_dimension_numbers<[1], [0], [0], [1], [0, 0, 1, 1], [], []>} : vector<16x256xbf16>, vector<256x256xbf16>, vector<16x256xf32> -> vector<16x256xf32>
    %c0_3 = arith.constant 0 : index
    %c0_4 = arith.constant 0 : index
    %4 = vector.load %arg3[%c0_3, %c0_4] : memref<1x256xf32, #tpu.memory_space<vmem>>, vector<1x256xf32>
    %5 = vector.broadcast %4 : vector<1x256xf32> to vector<16x256xf32>
    %6 = arith.addf %3, %5 : vector<16x256xf32>
    %cst_5 = arith.constant 0.000000e+00 : f32
    %7 = vector.broadcast %cst_5 : f32 to vector<16x256xf32>
    %8 = arith.maximumf %6, %7 : vector<16x256xf32>
    %9 = arith.truncf %8 : vector<16x256xf32> to vector<16x256xbf16>
    %c0_6 = arith.constant 0 : index
    %c0_7 = arith.constant 0 : index
    %10 = vector.load %arg4[%c0_6, %c0_7] : memref<256x512xbf16, #tpu.memory_space<vmem>>, vector<256x512xbf16>
    %cst_8 = arith.constant dense<0.000000e+00> : vector<16x512xf32>
    %11 = tpu.matmul %9, %10, %cst_8 {dimension_numbers = #tpu.dot_dimension_numbers<[1], [0], [0], [1], [0, 0, 1, 1], [], []>} : vector<16x256xbf16>, vector<256x512xbf16>, vector<16x512xf32> -> vector<16x512xf32>
    %c0_9 = arith.constant 0 : index
    %c0_10 = arith.constant 0 : index
    %12 = vector.load %arg5[%c0_9, %c0_10] : memref<1x512xf32, #tpu.memory_space<vmem>>, vector<1x512xf32>
    %13 = vector.broadcast %12 : vector<1x512xf32> to vector<16x512xf32>
    %14 = arith.addf %11, %13 : vector<16x512xf32>
    %cst_11 = arith.constant 0.000000e+00 : f32
    %15 = vector.broadcast %cst_11 : f32 to vector<16x512xf32>
    %16 = arith.maximumf %14, %15 : vector<16x512xf32>
    %c0_12 = arith.constant 0 : index
    %c0_13 = arith.constant 0 : index
    %17 = vector.load %arg6[%c0_12, %c0_13] : memref<1x512xf32, #tpu.memory_space<vmem>>, vector<1x512xf32>
    %18 = vector.broadcast %17 : vector<1x512xf32> to vector<16x512xf32>
    %19 = arith.mulf %16, %18 : vector<16x512xf32>
    %cst_14 = arith.constant dense<0.000000e+00> : vector<16xf32>
    %20 = vector.multi_reduction <add>, %19, %cst_14 [1] : vector<16x512xf32> to vector<16xf32>
    %21 = vector.shape_cast %20 : vector<16xf32> to vector<16x1xf32>
    %c0_15 = arith.constant 0 : index
    %22 = memref.load %arg7[%c0_15] : memref<1xf32, #tpu.memory_space<smem>>
    %23 = vector.broadcast %22 : f32 to vector<16x1xf32>
    %24 = arith.addf %21, %23 : vector<16x1xf32>
    %25 = arith.negf %24 : vector<16x1xf32>
    %26 = math.exp %25 : vector<16x1xf32>
    %cst_16 = arith.constant 1.000000e+00 : f32
    %27 = vector.broadcast %cst_16 : f32 to vector<16x1xf32>
    %28 = arith.addf %27, %26 : vector<16x1xf32>
    %29 = arith.divf %27, %28 : vector<16x1xf32>
    %c0_17 = arith.constant 0 : index
    %c0_18 = arith.constant 0 : index
    %30 = vector.load %arg8[%c0_17, %c0_18] : memref<16x1xf32, #tpu.memory_space<vmem>>, vector<16x1xf32>
    tpu.vector_store %arg8[%c0_17, %c0_18], %29 {strides = array<i32>} : memref<16x1xf32, #tpu.memory_space<vmem>>, vector<16x1xf32>,
    return
  }
  func.func @transform_0(%arg0: i32) -> (i32, i32) {
    %c0_i32 = arith.constant 0 : i32
    %c0_i32_0 = arith.constant 0 : i32
    return %arg0, %c0_i32 : i32, i32
  }
  func.func @transform_1(%arg0: i32) -> (i32, i32) {
    %c0_i32 = arith.constant 0 : i32
    %c0_i32_0 = arith.constant 0 : i32
    %c0_i32_1 = arith.constant 0 : i32
    return %c0_i32, %c0_i32_0 : i32, i32
  }
  func.func @transform_2(%arg0: i32) -> (i32, i32) {
    %c0_i32 = arith.constant 0 : i32
    %c0_i32_0 = arith.constant 0 : i32
    %c0_i32_1 = arith.constant 0 : i32
    return %c0_i32, %c0_i32_0 : i32, i32
  }
  func.func @transform_3(%arg0: i32) -> (i32, i32) {
    %c0_i32 = arith.constant 0 : i32
    %c0_i32_0 = arith.constant 0 : i32
    %c0_i32_1 = arith.constant 0 : i32
    return %c0_i32, %c0_i32_0 : i32, i32
  }
  func.func @transform_4(%arg0: i32) -> (i32, i32) {
    %c0_i32 = arith.constant 0 : i32
    %c0_i32_0 = arith.constant 0 : i32
    %c0_i32_1 = arith.constant 0 : i32
    return %c0_i32, %c0_i32_0 : i32, i32
  }
  func.func @transform_5(%arg0: i32) -> (i32, i32) {
    %c0_i32 = arith.constant 0 : i32
    %c0_i32_0 = arith.constant 0 : i32
    %c0_i32_1 = arith.constant 0 : i32
    return %c0_i32, %c0_i32_0 : i32, i32
  }
  func.func @transform_6(%arg0: i32) -> i32 {
    %c0_i32 = arith.constant 0 : i32
    %c0_i32_0 = arith.constant 0 : i32
    return %c0_i32 : i32
  }
  func.func @transform_7(%arg0: i32) -> (i32, i32) {
    %c0_i32 = arith.constant 0 : i32
    %c0_i32_0 = arith.constant 0 : i32
    return %arg0, %c0_i32 : i32, i32
  }
}

</mosaic_0001>

<llo_original>
// kernel: tpu_custom_call.1
$region0: #{tpu_custom_call.1}
  #allocation0 [shape = 'u32[]', space=smem, size = 0x4, offset = 0x4, fixed_abs, tag = 'smem constant byte address 0x4 - core index']
  #allocation1 [shape = 'u32[144,128]{1,0:T(1,128)}', space=vmem, size = 0x12000, scoped, tag = 'internal scratch']
  #allocation2 [shape = 'f32[1]{0:T(128)S(6)}', space=smem, size = 0x200, scoped, tag = 'scoped memory for tpu_custom_call.1']
  %s0 = inlined_call_operand.hbm [shape: f32[16,256], index: 0, kind: input, shape index: {}]
  %s1 = inlined_call_operand.hbm [shape: bf16[256,256], index: 1, kind: input, shape index: {}]
  %s2 = inlined_call_operand.hbm [shape: f32[1,256], index: 2, kind: input, shape index: {}]
  %s3 = inlined_call_operand.hbm [shape: bf16[256,512], index: 3, kind: input, shape index: {}]
  %s4 = inlined_call_operand.vmem [shape: f32[1,512], index: 4, kind: input, shape index: {}]
  %s5 = inlined_call_operand.vmem [shape: f32[1,512], index: 5, kind: input, shape index: {}]
  %s6 = inlined_call_operand.<no memory space> [shape: f32[1], index: 6, kind: input, shape index: {}]
  %s7 = inlined_call_operand.vmem [shape: f32[16,1], index: 7, kind: output, shape index: {}]
  %s8 = sld [smem:[#allocation0]]
  $region54: #{tpu_custom_call.1} parent=0
    _
  %s10 = ssub.s32 1, %s8
  %s11 = scalar_select 0, %s10, %s8
  %12 = sst [smem:[#allocation2]] %s6
  $region1: #{tpu_custom_call.1} parent=0
    #allocation3 [shape = 'u8[16384]{0}', space=vmem, size = 0x4000, scoped, tag = 'input window, operand 0, single buffered']
    #allocation4 [shape = 's32[1]{0}', space=sflag, size = 0x4, scoped, tag = 'scoped memory for tpu_custom_call.1']
    #allocation5 [shape = 'u8[131072]{0}', space=vmem, size = 0x20000, scoped, tag = 'input window, operand 1, single buffered']
    #allocation6 [shape = 's32[1]{0}', space=sflag, size = 0x4, scoped, tag = 'scoped memory for tpu_custom_call.1']
    #allocation7 [shape = 'u8[1024]{0}', space=vmem, size = 0x400, scoped, tag = 'input window, operand 2, single buffered']
    #allocation8 [shape = 'u8[262144]{0}', space=vmem, size = 0x40000, scoped, tag = 'input window, operand 3, single buffered']
    #allocation9 [shape = 's32[1]{0}', space=sflag, size = 0x4, scoped, tag = 'scoped memory for tpu_custom_call.1']
    %13 = vsyncpa [#allocation4], 0
    %14 = vsyncpa [#allocation6], 0
    %15 = vsyncpa [#allocation9], 0
    // Predicated region
    $region2: #{tpu_custom_call.1} parent=1 // pred_check
      _
    $region3: #{tpu_custom_call.1} parent=1 // pred_check_branch
      %17 = sbr.rel (0) target = $region5
    $region4: #{tpu_custom_call.1} parent=1 // pred_region
      %s19 = ssub.s32 512, 512
      %20 = vsyncadd [#allocation4], %s19
      %s21 = sshll.u32 [#allocation3], 4
      %s22 = int_to_ptr.vmem [resolvable:$true] %s21
      %27 = dma.hbm_to_vmem [thread:$0]  %s0, 512, %s22, [#allocation4], 256, 256, 16
    $region5: #{tpu_custom_call.1} parent=1 // pred_fallthru
      _
    // Predicated region
    $region6: #{tpu_custom_call.1} parent=1 // pred_check
      _
    $region7: #{tpu_custom_call.1} parent=1 // pred_check_branch
      %29 = sbr.rel (0) target = $region9
    $region8: #{tpu_custom_call.1} parent=1 // pred_region
      %s31 = ssub.s32 4096, 4096
      %32 = vsyncadd [#allocation6], %s31
      %s33 = sshll.u32 [#allocation5], 4
      %s34 = int_to_ptr.vmem [resolvable:$true] %s33
      %39 = dma.hbm_to_vmem [thread:$0]  %s1, 4096, %s34, [#allocation6], 128, 128, 8
    $region9: #{tpu_custom_call.1} parent=1 // pred_fallthru
      _
    // Predicated region
    $region10: #{tpu_custom_call.1} parent=1 // pred_check
      _
    $region11: #{tpu_custom_call.1} parent=1 // pred_check_branch
      %41 = sbr.rel (0) target = $region13
    $region12: #{tpu_custom_call.1} parent=1 // pred_region
      %s43 = ssub.s32 32, 32
      %44 = vsyncadd [#allocation6], %s43
      %s46 = sshll.u32 [#allocation7], 4
      %s47 = int_to_ptr.vmem [resolvable:$true] %s46
      %49 = dma.hbm_to_vmem [thread:$0]  %s2, 32, %s47, [#allocation6]
    $region13: #{tpu_custom_call.1} parent=1 // pred_fallthru
      _
    // Predicated region
    $region14: #{tpu_custom_call.1} parent=1 // pred_check
      _
    $region15: #{tpu_custom_call.1} parent=1 // pred_check_branch
      %51 = sbr.rel (0) target = $region17
    $region16: #{tpu_custom_call.1} parent=1 // pred_region
      %s53 = ssub.s32 8192, 8192
      %54 = vsyncadd [#allocation9], %s53
      %s55 = sshll.u32 [#allocation8], 4
      %s56 = int_to_ptr.vmem [resolvable:$true] %s55
      %61 = dma.hbm_to_vmem [thread:$0]  %s3, 8192, %s56, [#allocation9], 256, 256, 16
    $region17: #{tpu_custom_call.1} parent=1 // pred_fallthru
      _
    // Predicated region
    $region18: #{tpu_custom_call.1} parent=1 // pred_check
      _
    $region19: #{tpu_custom_call.1} parent=1 // pred_check_branch
      %63 = sbr.rel (0) target = $region21
    $region20: #{tpu_custom_call.1} parent=1 // pred_region
      _
    $region21: #{tpu_custom_call.1} parent=1 // pred_fallthru
      _
    // Predicated region
    $region22: #{tpu_custom_call.1} parent=1 // pred_check
      _
    $region23: #{tpu_custom_call.1} parent=1 // pred_check_branch
      %65 = sbr.rel (0) target = $region25
    $region24: #{tpu_custom_call.1} parent=1 // pred_region
      _
    $region25: #{tpu_custom_call.1} parent=1 // pred_fallthru
      _
    // Predicated region
    $region26: #{tpu_custom_call.1} parent=1 // pred_check
      _
    $region27: #{tpu_custom_call.1} parent=1 // pred_check_branch
      %67 = sbr.rel (0) target = $region29
    $region28: #{tpu_custom_call.1} parent=1 // pred_region
      _
    $region29: #{tpu_custom_call.1} parent=1 // pred_fallthru
      _
    // Predicated region
    $region30: #{tpu_custom_call.1} parent=1 // pred_check
      _
    $region31: #{tpu_custom_call.1} parent=1 // pred_check_branch
      %69 = sbr.rel (0) target = $region33
    $region32: #{tpu_custom_call.1} parent=1 // pred_region
      %70 = dma.done [#allocation4], 512
    $region33: #{tpu_custom_call.1} parent=1 // pred_fallthru
      _
    // Predicated region
    $region34: #{tpu_custom_call.1} parent=1 // pred_check
      _
    $region35: #{tpu_custom_call.1} parent=1 // pred_check_branch
      %72 = sbr.rel (0) target = $region37
    $region36: #{tpu_custom_call.1} parent=1 // pred_region
      %73 = dma.done [#allocation6], 4096
    $region37: #{tpu_custom_call.1} parent=1 // pred_fallthru
      _
    // Predicated region
    $region38: #{tpu_custom_call.1} parent=1 // pred_check
      _
    $region39: #{tpu_custom_call.1} parent=1 // pred_check_branch
      %75 = sbr.rel (0) target = $region41
    $region40: #{tpu_custom_call.1} parent=1 // pred_region
      %76 = dma.done [#allocation6], 32
    $region41: #{tpu_custom_call.1} parent=1 // pred_fallthru
      _
    // Predicated region
    $region42: #{tpu_custom_call.1} parent=1 // pred_check
      _
    $region43: #{tpu_custom_call.1} parent=1 // pred_check_branch
      %78 = sbr.rel (0) target = $region45
    $region44: #{tpu_custom_call.1} parent=1 // pred_region
      %79 = dma.done [#allocation9], 8192
    $region45: #{tpu_custom_call.1} parent=1 // pred_fallthru
      _
    %v80 = vld [vmem:[#allocation3] sm:$0xff]
    %v81 = vld [vmem:[#allocation3 + $0x8] sm:$0xff]
    %v82 = vld [vmem:[#allocation3 + $0x10] sm:$0xff]
    %v83 = vld [vmem:[#allocation3 + $0x18] sm:$0xff]
    %v84 = vpack.c.bf16 %v82, %v80
    %v85 = vpack.c.bf16 %v83, %v81
    %v86 = vld [vmem:[#allocation5] sm:$0xff]
    %v87 = vld [vmem:[#allocation5 + $0x8] sm:$0xff]
    %v88 = vld [vmem:[#allocation5 + $0x10] sm:$0xff]
    %v89 = vld [vmem:[#allocation5 + $0x18] sm:$0xff]
    %v90 = vld [vmem:[#allocation5 + $0x20] sm:$0xff]
    %v91 = vld [vmem:[#allocation5 + $0x28] sm:$0xff]
    %v92 = vld [vmem:[#allocation5 + $0x30] sm:$0xff]
    %v93 = vld [vmem:[#allocation5 + $0x38] sm:$0xff]
    %v94 = vld [vmem:[#allocation5 + $0x40] sm:$0xff]
    %v95 = vld [vmem:[#allocation5 + $0x48] sm:$0xff]
    %v96 = vld [vmem:[#allocation5 + $0x50] sm:$0xff]
    %v97 = vld [vmem:[#allocation5 + $0x58] sm:$0xff]
    %v98 = vld [vmem:[#allocation5 + $0x60] sm:$0xff]
    %v99 = vld [vmem:[#allocation5 + $0x68] sm:$0xff]
    %v100 = vld [vmem:[#allocation5 + $0x70] sm:$0xff]
    %v101 = vld [vmem:[#allocation5 + $0x78] sm:$0xff]
    %v102 = vld [vmem:[#allocation5 + $0x80] sm:$0xff]
    %v103 = vld [vmem:[#allocation5 + $0x88] sm:$0xff]
    %v104 = vld [vmem:[#allocation5 + $0x90] sm:$0xff]
    %v105 = vld [vmem:[#allocation5 + $0x98] sm:$0xff]
    %v106 = vld [vmem:[#allocation5 + $0xa0] sm:$0xff]
    %v107 = vld [vmem:[#allocation5 + $0xa8] sm:$0xff]
    %v108 = vld [vmem:[#allocation5 + $0xb0] sm:$0xff]
    %v109 = vld [vmem:[#allocation5 + $0xb8] sm:$0xff]
    %v110 = vld [vmem:[#allocation5 + $0xc0] sm:$0xff]
    %v111 = vld [vmem:[#allocation5 + $0xc8] sm:$0xff]
    %v112 = vld [vmem:[#allocation5 + $0xd0] sm:$0xff]
    %v113 = vld [vmem:[#allocation5 + $0xd8] sm:$0xff]
    %v114 = vld [vmem:[#allocation5 + $0xe0] sm:$0xff]
    %v115 = vld [vmem:[#allocation5 + $0xe8] sm:$0xff]
    %v116 = vld [vmem:[#allocation5 + $0xf0] sm:$0xff]
    %v117 = vld [vmem:[#allocation5 + $0xf8] sm:$0xff]
    %v118 = vld [vmem:[#allocation7] sm:$0x3]
    %v120 = vlaneseq
    %v121 = vshrl.u32 %v120, 7
    %v122 = vsub.s32 0, %v121
    %v123 = vrot.slane %v118, %v122
    %v124 = vlaneseq
    %v125 = vshrl.u32 %v124, 7
    %v126 = vsub.s32 1, %v125
    %v127 = vrot.slane %v118, %v126
    %v162 = vunpack.c.l.b16 %v86
    %v163 = vunpack.c.h.b16 %v86
    %v164 = vunpack.c.l.b16 %v87
    %v165 = vunpack.c.h.b16 %v87
    %v166 = vunpack.c.l.b16 %v88
    %v167 = vunpack.c.h.b16 %v88
    %v168 = vunpack.c.l.b16 %v89
    %v169 = vunpack.c.h.b16 %v89
    %v170 = vunpack.c.l.b16 %v90
    %v171 = vunpack.c.h.b16 %v90
    %v172 = vunpack.c.l.b16 %v91
    %v173 = vunpack.c.h.b16 %v91
    %v174 = vunpack.c.l.b16 %v92
    %v175 = vunpack.c.h.b16 %v92
    %v176 = vunpack.c.l.b16 %v93
    %v177 = vunpack.c.h.b16 %v93
    %v178 = vunpack.c.l.b16 %v94
    %v179 = vunpack.c.h.b16 %v94
    %v180 = vunpack.c.l.b16 %v95
    %v181 = vunpack.c.h.b16 %v95
    %v182 = vunpack.c.l.b16 %v96
    %v183 = vunpack.c.h.b16 %v96
    %v184 = vunpack.c.l.b16 %v97
    %v185 = vunpack.c.h.b16 %v97
    %v186 = vunpack.c.l.b16 %v98
    %v187 = vunpack.c.h.b16 %v98
    %v188 = vunpack.c.l.b16 %v99
    %v189 = vunpack.c.h.b16 %v99
    %v190 = vunpack.c.l.b16 %v100
    %v191 = vunpack.c.h.b16 %v100
    %v192 = vunpack.c.l.b16 %v101
    %v193 = vunpack.c.h.b16 %v101
    %v194 = vunpack.c.l.b16 %v102
    %v195 = vunpack.c.h.b16 %v102
    %v196 = vunpack.c.l.b16 %v103
    %v197 = vunpack.c.h.b16 %v103
    %v198 = vunpack.c.l.b16 %v104
    %v199 = vunpack.c.h.b16 %v104
    %v200 = vunpack.c.l.b16 %v105
    %v201 = vunpack.c.h.b16 %v105
    %v202 = vunpack.c.l.b16 %v106
    %v203 = vunpack.c.h.b16 %v106
    %v204 = vunpack.c.l.b16 %v107
    %v205 = vunpack.c.h.b16 %v107
    %v206 = vunpack.c.l.b16 %v108
    %v207 = vunpack.c.h.b16 %v108
    %v208 = vunpack.c.l.b16 %v109
    %v209 = vunpack.c.h.b16 %v109
    %v210 = vunpack.c.l.b16 %v110
    %v211 = vunpack.c.h.b16 %v110
    %v212 = vunpack.c.l.b16 %v111
    %v213 = vunpack.c.h.b16 %v111
    %v214 = vunpack.c.l.b16 %v112
    %v215 = vunpack.c.h.b16 %v112
    %v216 = vunpack.c.l.b16 %v113
    %v217 = vunpack.c.h.b16 %v113
    %v218 = vunpack.c.l.b16 %v114
    %v219 = vunpack.c.h.b16 %v114
    %v220 = vunpack.c.l.b16 %v115
    %v221 = vunpack.c.h.b16 %v115
    %v222 = vunpack.c.l.b16 %v116
    %v223 = vunpack.c.h.b16 %v116
    %v224 = vunpack.c.l.b16 %v117
    %v225 = vunpack.c.h.b16 %v117
    %v226 = vpack.c.b16 %v164, %v162
    %v227 = vpack.c.b16 %v165, %v163
    %v228 = vpack.c.b16 %v168, %v166
    %v229 = vpack.c.b16 %v169, %v167
    %v230 = vpack.c.b16 %v172, %v170
    %v231 = vpack.c.b16 %v173, %v171
    %v232 = vpack.c.b16 %v176, %v174
    %v233 = vpack.c.b16 %v177, %v175
    %v234 = vpack.c.b16 %v180, %v178
    %v235 = vpack.c.b16 %v181, %v179
    %v236 = vpack.c.b16 %v184, %v182
    %v237 = vpack.c.b16 %v185, %v183
    %v238 = vpack.c.b16 %v188, %v186
    %v239 = vpack.c.b16 %v189, %v187
    %v240 = vpack.c.b16 %v192, %v190
    %v241 = vpack.c.b16 %v193, %v191
    %v242 = vpack.c.b16 %v196, %v194
    %v243 = vpack.c.b16 %v197, %v195
    %v244 = vpack.c.b16 %v200, %v198
    %v245 = vpack.c.b16 %v201, %v199
    %v246 = vpack.c.b16 %v204, %v202
    %v247 = vpack.c.b16 %v205, %v203
    %v248 = vpack.c.b16 %v208, %v206
    %v249 = vpack.c.b16 %v209, %v207
    %v250 = vpack.c.b16 %v212, %v210
    %v251 = vpack.c.b16 %v213, %v211
    %v252 = vpack.c.b16 %v216, %v214
    %v253 = vpack.c.b16 %v217, %v215
    %v254 = vpack.c.b16 %v220, %v218
    %v255 = vpack.c.b16 %v221, %v219
    %v256 = vpack.c.b16 %v224, %v222
    %v257 = vpack.c.b16 %v225, %v223
    %290 = vmatprep.subr.bf16.mxu0 %v241
    %291 = vmatpush1.bf16.msra.mxu0 %v240
    %292 = vmatprep.subr.bf16.mxu0 %v239
    %293 = vmatpush1.bf16.msra.mxu0 %v238
    %294 = vmatprep.subr.bf16.mxu0 %v237
    %295 = vmatpush1.bf16.msra.mxu0 %v236
    %296 = vmatprep.subr.bf16.mxu0 %v235
    %297 = vmatpush1.bf16.msra.mxu0 %v234
    %298 = vmatprep.subr.bf16.mxu0 %v233
    %299 = vmatpush1.bf16.msra.mxu0 %v232
    %300 = vmatprep.subr.bf16.mxu0 %v231
    %301 = vmatpush1.bf16.msra.mxu0 %v230
    %302 = vmatprep.subr.bf16.mxu0 %v229
    %303 = vmatpush1.bf16.msra.mxu0 %v228
    %304 = vmatprep.subr.bf16.mxu0 %v227
    %305 = vmatpush1.bf16.msra.mxu0 %v226
    %306 = vmatprep.subr.bf16.mxu0 %v257
    %307 = vmatpush2.bf16.msra.mxu0 %v256
    %308 = vmatprep.subr.bf16.mxu0 %v255
    %309 = vmatpush2.bf16.msra.mxu0 %v254
    %310 = vmatprep.subr.bf16.mxu0 %v253
    %311 = vmatpush2.bf16.msra.mxu0 %v252
    %312 = vmatprep.subr.bf16.mxu0 %v251
    %313 = vmatpush2.bf16.msra.mxu0 %v250
    %314 = vmatprep.subr.bf16.mxu0 %v249
    %315 = vmatpush2.bf16.msra.mxu0 %v248
    %316 = vmatprep.subr.bf16.mxu0 %v247
    %317 = vmatpush2.bf16.msra.mxu0 %v246
    %318 = vmatprep.subr.bf16.mxu0 %v245
    %319 = vmatpush2.bf16.msra.mxu0 %v244
    %320 = vmatprep.subr.bf16.mxu0 %v243
    %321 = vmatpush2.bf16.msra.mxu0 %v242
    %322 = vmatprep.mubr.bf16.mxu0 %v85
    %323 = vmatmul.mubr.bf16.gmra.mxu0 %v84
    %v324 = vpop.f32.mrf.mxu0
    %v325 = vadd.f32 %v123, %v324
    %v326 = vpop.f32.mrf.mxu0
    %v327 = vadd.f32 %v127, %v326
    %v328 = vpop.f32.mrf.mxu0
    %v329 = vadd.f32 %v123, %v328
    %v330 = vpop.f32.mrf.mxu0
    %v331 = vadd.f32 %v127, %v330
    %332 = vdwg.mxu0
    %v333 = vmax.f32 %v325, 0.0
    %v334 = vmax.f32 %v327, 0.0
    %v335 = vmax.f32 %v329, 0.0
    %v336 = vmax.f32 %v331, 0.0
    %v337 = vpack.c.bf16 %v335, %v333
    %v338 = vpack.c.bf16 %v336, %v334
    %v339 = vld [vmem:[#allocation8] sm:$0xff]
    %v340 = vld [vmem:[#allocation8 + $0x8] sm:$0xff]
    %v341 = vld [vmem:[#allocation8 + $0x10] sm:$0xff]
    %v342 = vld [vmem:[#allocation8 + $0x18] sm:$0xff]
    %v343 = vld [vmem:[#allocation8 + $0x20] sm:$0xff]
    %v344 = vld [vmem:[#allocation8 + $0x28] sm:$0xff]
    %v345 = vld [vmem:[#allocation8 + $0x30] sm:$0xff]
    %v346 = vld [vmem:[#allocation8 + $0x38] sm:$0xff]
    %v347 = vld [vmem:[#allocation8 + $0x40] sm:$0xff]
    %v348 = vld [vmem:[#allocation8 + $0x48] sm:$0xff]
    %v349 = vld [vmem:[#allocation8 + $0x50] sm:$0xff]
    %v350 = vld [vmem:[#allocation8 + $0x58] sm:$0xff]
    %v351 = vld [vmem:[#allocation8 + $0x60] sm:$0xff]
    %v352 = vld [vmem:[#allocation8 + $0x68] sm:$0xff]
    %v353 = vld [vmem:[#allocation8 + $0x70] sm:$0xff]
    %v354 = vld [vmem:[#allocation8 + $0x78] sm:$0xff]
    %v355 = vld [vmem:[#allocation8 + $0x80] sm:$0xff]
    %v356 = vld [vmem:[#allocation8 + $0x88] sm:$0xff]
    %v357 = vld [vmem:[#allocation8 + $0x90] sm:$0xff]
    %v358 = vld [vmem:[#allocation8 + $0x98] sm:$0xff]
    %v359 = vld [vmem:[#allocation8 + $0xa0] sm:$0xff]
    %v360 = vld [vmem:[#allocation8 + $0xa8] sm:$0xff]
    %v361 = vld [vmem:[#allocation8 + $0xb0] sm:$0xff]
    %v362 = vld [vmem:[#allocation8 + $0xb8] sm:$0xff]
    %v363 = vld [vmem:[#allocation8 + $0xc0] sm:$0xff]
    %v364 = vld [vmem:[#allocation8 + $0xc8] sm:$0xff]
    %v365 = vld [vmem:[#allocation8 + $0xd0] sm:$0xff]
    %v366 = vld [vmem:[#allocation8 + $0xd8] sm:$0xff]
    %v367 = vld [vmem:[#allocation8 + $0xe0] sm:$0xff]
    %v368 = vld [vmem:[#allocation8 + $0xe8] sm:$0xff]
    %v369 = vld [vmem:[#allocation8 + $0xf0] sm:$0xff]
    %v370 = vld [vmem:[#allocation8 + $0xf8] sm:$0xff]
    %v371 = vld [vmem:[#allocation8 + $0x100] sm:$0xff]
    %v372 = vld [vmem:[#allocation8 + $0x108] sm:$0xff]
    %v373 = vld [vmem:[#allocation8 + $0x110] sm:$0xff]
    %v374 = vld [vmem:[#allocation8 + $0x118] sm:$0xff]
    %v375 = vld [vmem:[#allocation8 + $0x120] sm:$0xff]
    %v376 = vld [vmem:[#allocation8 + $0x128] sm:$0xff]
    %v377 = vld [vmem:[#allocation8 + $0x130] sm:$0xff]
    %v378 = vld [vmem:[#allocation8 + $0x138] sm:$0xff]
    %v379 = vld [vmem:[#allocation8 + $0x140] sm:$0xff]
    %v380 = vld [vmem:[#allocation8 + $0x148] sm:$0xff]
    %v381 = vld [vmem:[#allocation8 + $0x150] sm:$0xff]
    %v382 = vld [vmem:[#allocation8 + $0x158] sm:$0xff]
    %v383 = vld [vmem:[#allocation8 + $0x160] sm:$0xff]
    %v384 = vld [vmem:[#allocation8 + $0x168] sm:$0xff]
    %v385 = vld [vmem:[#allocation8 + $0x170] sm:$0xff]
    %v386 = vld [vmem:[#allocation8 + $0x178] sm:$0xff]
    %v387 = vld [vmem:[#allocation8 + $0x180] sm:$0xff]
    %v388 = vld [vmem:[#allocation8 + $0x188] sm:$0xff]
    %v389 = vld [vmem:[#allocation8 + $0x190] sm:$0xff]
    %v390 = vld [vmem:[#allocation8 + $0x198] sm:$0xff]
    %v391 = vld [vmem:[#allocation8 + $0x1a0] sm:$0xff]
    %v392 = vld [vmem:[#allocation8 + $0x1a8] sm:$0xff]
    %v393 = vld [vmem:[#allocation8 + $0x1b0] sm:$0xff]
    %v394 = vld [vmem:[#allocation8 + $0x1b8] sm:$0xff]
    %v395 = vld [vmem:[#allocation8 + $0x1c0] sm:$0xff]
    %v396 = vld [vmem:[#allocation8 + $0x1c8] sm:$0xff]
    %v397 = vld [vmem:[#allocation8 + $0x1d0] sm:$0xff]
    %v398 = vld [vmem:[#allocation8 + $0x1d8] sm:$0xff]
    %v399 = vld [vmem:[#allocation8 + $0x1e0] sm:$0xff]
    %v400 = vld [vmem:[#allocation8 + $0x1e8] sm:$0xff]
    %v401 = vld [vmem:[#allocation8 + $0x1f0] sm:$0xff]
    %v402 = vld [vmem:[#allocation8 + $0x1f8] sm:$0xff]
    %v403 = vld [vmem:[%s4] sm:$0xf]
    %v405 = vlaneseq
    %v406 = vshrl.u32 %v405, 7
    %v407 = vsub.s32 0, %v406
    %v408 = vrot.slane %v403, %v407
    %v409 = vlaneseq
    %v410 = vshrl.u32 %v409, 7
    %v411 = vsub.s32 1, %v410
    %v412 = vrot.slane %v403, %v411
    %v413 = vlaneseq
    %v414 = vshrl.u32 %v413, 7
    %v415 = vsub.s32 2, %v414
    %v416 = vrot.slane %v403, %v415
    %v417 = vlaneseq
    %v418 = vshrl.u32 %v417, 7
    %v419 = vsub.s32 3, %v418
    %v420 = vrot.slane %v403, %v419
    %v489 = vunpack.c.l.b16 %v339
    %v490 = vunpack.c.h.b16 %v339
    %v491 = vunpack.c.l.b16 %v340
    %v492 = vunpack.c.h.b16 %v340
    %v493 = vunpack.c.l.b16 %v341
    %v494 = vunpack.c.h.b16 %v341
    %v495 = vunpack.c.l.b16 %v342
    %v496 = vunpack.c.h.b16 %v342
    %v497 = vunpack.c.l.b16 %v343
    %v498 = vunpack.c.h.b16 %v343
    %v499 = vunpack.c.l.b16 %v344
    %v500 = vunpack.c.h.b16 %v344
    %v501 = vunpack.c.l.b16 %v345
    %v502 = vunpack.c.h.b16 %v345
    %v503 = vunpack.c.l.b16 %v346
    %v504 = vunpack.c.h.b16 %v346
    %v505 = vunpack.c.l.b16 %v347
    %v506 = vunpack.c.h.b16 %v347
    %v507 = vunpack.c.l.b16 %v348
    %v508 = vunpack.c.h.b16 %v348
    %v509 = vunpack.c.l.b16 %v349
    %v510 = vunpack.c.h.b16 %v349
    %v511 = vunpack.c.l.b16 %v350
    %v512 = vunpack.c.h.b16 %v350
    %v513 = vunpack.c.l.b16 %v351
    %v514 = vunpack.c.h.b16 %v351
    %v515 = vunpack.c.l.b16 %v352
    %v516 = vunpack.c.h.b16 %v352
    %v517 = vunpack.c.l.b16 %v353
    %v518 = vunpack.c.h.b16 %v353
    %v519 = vunpack.c.l.b16 %v354
    %v520 = vunpack.c.h.b16 %v354
    %v521 = vunpack.c.l.b16 %v355
    %v522 = vunpack.c.h.b16 %v355
    %v523 = vunpack.c.l.b16 %v356
    %v524 = vunpack.c.h.b16 %v356
    %v525 = vunpack.c.l.b16 %v357
    %v526 = vunpack.c.h.b16 %v357
    %v527 = vunpack.c.l.b16 %v358
    %v528 = vunpack.c.h.b16 %v358
    %v529 = vunpack.c.l.b16 %v359
    %v530 = vunpack.c.h.b16 %v359
    %v531 = vunpack.c.l.b16 %v360
    %v532 = vunpack.c.h.b16 %v360
    %v533 = vunpack.c.l.b16 %v361
    %v534 = vunpack.c.h.b16 %v361
    %v535 = vunpack.c.l.b16 %v362
    %v536 = vunpack.c.h.b16 %v362
    %v537 = vunpack.c.l.b16 %v363
    %v538 = vunpack.c.h.b16 %v363
    %v539 = vunpack.c.l.b16 %v364
    %v540 = vunpack.c.h.b16 %v364
    %v541 = vunpack.c.l.b16 %v365
    %v542 = vunpack.c.h.b16 %v365
    %v543 = vunpack.c.l.b16 %v366
    %v544 = vunpack.c.h.b16 %v366
    %v545 = vunpack.c.l.b16 %v367
    %v546 = vunpack.c.h.b16 %v367
    %v547 = vunpack.c.l.b16 %v368
    %v548 = vunpack.c.h.b16 %v368
    %v549 = vunpack.c.l.b16 %v369
    %v550 = vunpack.c.h.b16 %v369
    %v551 = vunpack.c.l.b16 %v370
    %v552 = vunpack.c.h.b16 %v370
    %v553 = vunpack.c.l.b16 %v371
    %v554 = vunpack.c.h.b16 %v371
    %v555 = vunpack.c.l.b16 %v372
    %v556 = vunpack.c.h.b16 %v372
    %v557 = vunpack.c.l.b16 %v373
    %v558 = vunpack.c.h.b16 %v373
    %v559 = vunpack.c.l.b16 %v374
    %v560 = vunpack.c.h.b16 %v374
    %v561 = vunpack.c.l.b16 %v375
    %v562 = vunpack.c.h.b16 %v375
    %v563 = vunpack.c.l.b16 %v376
    %v564 = vunpack.c.h.b16 %v376
    %v565 = vunpack.c.l.b16 %v377
    %v566 = vunpack.c.h.b16 %v377
    %v567 = vunpack.c.l.b16 %v378
    %v568 = vunpack.c.h.b16 %v378
    %v569 = vunpack.c.l.b16 %v379
    %v570 = vunpack.c.h.b16 %v379
    %v571 = vunpack.c.l.b16 %v380
    %v572 = vunpack.c.h.b16 %v380
    %v573 = vunpack.c.l.b16 %v381
    %v574 = vunpack.c.h.b16 %v381
    %v575 = vunpack.c.l.b16 %v382
    %v576 = vunpack.c.h.b16 %v382
    %v577 = vunpack.c.l.b16 %v383
    %v578 = vunpack.c.h.b16 %v383
    %v579 = vunpack.c.l.b16 %v384
    %v580 = vunpack.c.h.b16 %v384
    %v581 = vunpack.c.l.b16 %v385
    %v582 = vunpack.c.h.b16 %v385
    %v583 = vunpack.c.l.b16 %v386
    %v584 = vunpack.c.h.b16 %v386
    %v585 = vunpack.c.l.b16 %v387
    %v586 = vunpack.c.h.b16 %v387
    %v587 = vunpack.c.l.b16 %v388
    %v588 = vunpack.c.h.b16 %v388
    %v589 = vunpack.c.l.b16 %v389
    %v590 = vunpack.c.h.b16 %v389
    %v591 = vunpack.c.l.b16 %v390
    %v592 = vunpack.c.h.b16 %v390
    %v593 = vunpack.c.l.b16 %v391
    %v594 = vunpack.c.h.b16 %v391
    %v595 = vunpack.c.l.b16 %v392
    %v596 = vunpack.c.h.b16 %v392
    %v597 = vunpack.c.l.b16 %v393
    %v598 = vunpack.c.h.b16 %v393
    %v599 = vunpack.c.l.b16 %v394
    %v600 = vunpack.c.h.b16 %v394
    %v601 = vunpack.c.l.b16 %v395
    %v602 = vunpack.c.h.b16 %v395
    %v603 = vunpack.c.l.b16 %v396
    %v604 = vunpack.c.h.b16 %v396
    %v605 = vunpack.c.l.b16 %v397
    %v606 = vunpack.c.h.b16 %v397
    %v607 = vunpack.c.l.b16 %v398
    %v608 = vunpack.c.h.b16 %v398
    %v609 = vunpack.c.l.b16 %v399
    %v610 = vunpack.c.h.b16 %v399
    %v611 = vunpack.c.l.b16 %v400
    %v612 = vunpack.c.h.b16 %v400
    %v613 = vunpack.c.l.b16 %v401
    %v614 = vunpack.c.h.b16 %v401
    %v615 = vunpack.c.l.b16 %v402
    %v616 = vunpack.c.h.b16 %v402
    %v617 = vpack.c.b16 %v493, %v489
    %v618 = vpack.c.b16 %v494, %v490
    %v619 = vpack.c.b16 %v495, %v491
    %v620 = vpack.c.b16 %v496, %v492
    %v621 = vpack.c.b16 %v501, %v497
    %v622 = vpack.c.b16 %v502, %v498
    %v623 = vpack.c.b16 %v503, %v499
    %v624 = vpack.c.b16 %v504, %v500
    %v625 = vpack.c.b16 %v509, %v505
    %v626 = vpack.c.b16 %v510, %v506
    %v627 = vpack.c.b16 %v511, %v507
    %v628 = vpack.c.b16 %v512, %v508
    %v629 = vpack.c.b16 %v517, %v513
    %v630 = vpack.c.b16 %v518, %v514
    %v631 = vpack.c.b16 %v519, %v515
    %v632 = vpack.c.b16 %v520, %v516
    %v633 = vpack.c.b16 %v525, %v521
    %v634 = vpack.c.b16 %v526, %v522
    %v635 = vpack.c.b16 %v527, %v523
    %v636 = vpack.c.b16 %v528, %v524
    %v637 = vpack.c.b16 %v533, %v529
    %v638 = vpack.c.b16 %v534, %v530
    %v639 = vpack.c.b16 %v535, %v531
    %v640 = vpack.c.b16 %v536, %v532
    %v641 = vpack.c.b16 %v541, %v537
    %v642 = vpack.c.b16 %v542, %v538
    %v643 = vpack.c.b16 %v543, %v539
    %v644 = vpack.c.b16 %v544, %v540
    %v645 = vpack.c.b16 %v549, %v545
    %v646 = vpack.c.b16 %v550, %v546
    %v647 = vpack.c.b16 %v551, %v547
    %v648 = vpack.c.b16 %v552, %v548
    %v649 = vpack.c.b16 %v557, %v553
    %v650 = vpack.c.b16 %v558, %v554
    %v651 = vpack.c.b16 %v559, %v555
    %v652 = vpack.c.b16 %v560, %v556
    %v653 = vpack.c.b16 %v565, %v561
    %v654 = vpack.c.b16 %v566, %v562
    %v655 = vpack.c.b16 %v567, %v563
    %v656 = vpack.c.b16 %v568, %v564
    %v657 = vpack.c.b16 %v573, %v569
    %v658 = vpack.c.b16 %v574, %v570
    %v659 = vpack.c.b16 %v575, %v571
    %v660 = vpack.c.b16 %v576, %v572
    %v661 = vpack.c.b16 %v581, %v577
    %v662 = vpack.c.b16 %v582, %v578
    %v663 = vpack.c.b16 %v583, %v579
    %v664 = vpack.c.b16 %v584, %v580
    %v665 = vpack.c.b16 %v589, %v585
    %v666 = vpack.c.b16 %v590, %v586
    %v667 = vpack.c.b16 %v591, %v587
    %v668 = vpack.c.b16 %v592, %v588
    %v669 = vpack.c.b16 %v597, %v593
    %v670 = vpack.c.b16 %v598, %v594
    %v671 = vpack.c.b16 %v599, %v595
    %v672 = vpack.c.b16 %v600, %v596
    %v673 = vpack.c.b16 %v605, %v601
    %v674 = vpack.c.b16 %v606, %v602
    %v675 = vpack.c.b16 %v607, %v603
    %v676 = vpack.c.b16 %v608, %v604
    %v677 = vpack.c.b16 %v613, %v609
    %v678 = vpack.c.b16 %v614, %v610
    %v679 = vpack.c.b16 %v615, %v611
    %v680 = vpack.c.b16 %v616, %v612
    %745 = vmatprep.subr.bf16.mxu0 %v646
    %746 = vmatpush1.bf16.msra.mxu0 %v645
    %747 = vmatprep.subr.bf16.mxu0 %v642
    %748 = vmatpush1.bf16.msra.mxu0 %v641
    %749 = vmatprep.subr.bf16.mxu0 %v638
    %750 = vmatpush1.bf16.msra.mxu0 %v637
    %751 = vmatprep.subr.bf16.mxu0 %v634
    %752 = vmatpush1.bf16.msra.mxu0 %v633
    %753 = vmatprep.subr.bf16.mxu0 %v630
    %754 = vmatpush1.bf16.msra.mxu0 %v629
    %755 = vmatprep.subr.bf16.mxu0 %v626
    %756 = vmatpush1.bf16.msra.mxu0 %v625
    %757 = vmatprep.subr.bf16.mxu0 %v622
    %758 = vmatpush1.bf16.msra.mxu0 %v621
    %759 = vmatprep.subr.bf16.mxu0 %v618
    %760 = vmatpush1.bf16.msra.mxu0 %v617
    %761 = vmatprep.subr.bf16.mxu0 %v678
    %762 = vmatpush2.bf16.msra.mxu0 %v677
    %763 = vmatprep.subr.bf16.mxu0 %v674
    %764 = vmatpush2.bf16.msra.mxu0 %v673
    %765 = vmatprep.subr.bf16.mxu0 %v670
    %766 = vmatpush2.bf16.msra.mxu0 %v669
    %767 = vmatprep.subr.bf16.mxu0 %v666
    %768 = vmatpush2.bf16.msra.mxu0 %v665
    %769 = vmatprep.subr.bf16.mxu0 %v662
    %770 = vmatpush2.bf16.msra.mxu0 %v661
    %771 = vmatprep.subr.bf16.mxu0 %v658
    %772 = vmatpush2.bf16.msra.mxu0 %v657
    %773 = vmatprep.subr.bf16.mxu0 %v654
    %774 = vmatpush2.bf16.msra.mxu0 %v653
    %775 = vmatprep.subr.bf16.mxu0 %v650
    %776 = vmatpush2.bf16.msra.mxu0 %v649
    %777 = vmatprep.mubr.bf16.mxu0 %v338
    %778 = vmatmul.mubr.bf16.gmra.mxu0 %v337
    %v779 = vpop.f32.mrf.mxu0
    %v780 = vadd.f32 %v408, %v779
    %v781 = vpop.f32.mrf.mxu0
    %v782 = vadd.f32 %v412, %v781
    %v783 = vpop.f32.mrf.mxu0
    %v784 = vadd.f32 %v408, %v783
    %v785 = vpop.f32.mrf.mxu0
    %v786 = vadd.f32 %v412, %v785
    %787 = vdwg.mxu0
    %788 = vmatprep.subr.bf16.mxu0 %v648
    %789 = vmatpush1.bf16.msra.mxu0 %v647
    %790 = vmatprep.subr.bf16.mxu0 %v644
    %791 = vmatpush1.bf16.msra.mxu0 %v643
    %792 = vmatprep.subr.bf16.mxu0 %v640
    %793 = vmatpush1.bf16.msra.mxu0 %v639
    %794 = vmatprep.subr.bf16.mxu0 %v636
    %795 = vmatpush1.bf16.msra.mxu0 %v635
    %796 = vmatprep.subr.bf16.mxu0 %v632
    %797 = vmatpush1.bf16.msra.mxu0 %v631
    %798 = vmatprep.subr.bf16.mxu0 %v628
    %799 = vmatpush1.bf16.msra.mxu0 %v627
    %800 = vmatprep.subr.bf16.mxu0 %v624
    %801 = vmatpush1.bf16.msra.mxu0 %v623
    %802 = vmatprep.subr.bf16.mxu0 %v620
    %803 = vmatpush1.bf16.msra.mxu0 %v619
    %804 = vmatprep.subr.bf16.mxu0 %v680
    %805 = vmatpush2.bf16.msra.mxu0 %v679
    %806 = vmatprep.subr.bf16.mxu0 %v676
    %807 = vmatpush2.bf16.msra.mxu0 %v675
    %808 = vmatprep.subr.bf16.mxu0 %v672
    %809 = vmatpush2.bf16.msra.mxu0 %v671
    %810 = vmatprep.subr.bf16.mxu0 %v668
    %811 = vmatpush2.bf16.msra.mxu0 %v667
    %812 = vmatprep.subr.bf16.mxu0 %v664
    %813 = vmatpush2.bf16.msra.mxu0 %v663
    %814 = vmatprep.subr.bf16.mxu0 %v660
    %815 = vmatpush2.bf16.msra.mxu0 %v659
    %816 = vmatprep.subr.bf16.mxu0 %v656
    %817 = vmatpush2.bf16.msra.mxu0 %v655
    %818 = vmatprep.subr.bf16.mxu0 %v652
    %819 = vmatpush2.bf16.msra.mxu0 %v651
    %820 = vmatprep.mubr.bf16.mxu0 %v338
    %821 = vmatmul.mubr.bf16.gmra.mxu0 %v337
    %v822 = vpop.f32.mrf.mxu0
    %v823 = vadd.f32 %v416, %v822
    %v824 = vpop.f32.mrf.mxu0
    %v825 = vadd.f32 %v420, %v824
    %v826 = vpop.f32.mrf.mxu0
    %v827 = vadd.f32 %v416, %v826
    %v828 = vpop.f32.mrf.mxu0
    %v829 = vadd.f32 %v420, %v828
    %830 = vdwg.mxu0
    %v831 = vmax.f32 %v780, 0.0
    %v832 = vmax.f32 %v782, 0.0
    %v833 = vmax.f32 %v823, 0.0
    %v834 = vmax.f32 %v825, 0.0
    %v835 = vmax.f32 %v784, 0.0
    %v836 = vmax.f32 %v786, 0.0
    %v837 = vmax.f32 %v827, 0.0
    %v838 = vmax.f32 %v829, 0.0
    %v839 = vld [vmem:[%s5] sm:$0xf]
    %v841 = vlaneseq
    %v842 = vshrl.u32 %v841, 7
    %v843 = vsub.s32 0, %v842
    %v844 = vrot.slane %v839, %v843
    %v845 = vlaneseq
    %v846 = vshrl.u32 %v845, 7
    %v847 = vsub.s32 1, %v846
    %v848 = vrot.slane %v839, %v847
    %v849 = vlaneseq
    %v850 = vshrl.u32 %v849, 7
    %v851 = vsub.s32 2, %v850
    %v852 = vrot.slane %v839, %v851
    %v853 = vlaneseq
    %v854 = vshrl.u32 %v853, 7
    %v855 = vsub.s32 3, %v854
    %v856 = vrot.slane %v839, %v855
    %v861 = vmul.f32 %v831, %v844
    %v862 = vmul.f32 %v832, %v848
    %v863 = vmul.f32 %v833, %v852
    %v864 = vmul.f32 %v834, %v856
    %v865 = vmul.f32 %v835, %v844
    %v866 = vmul.f32 %v836, %v848
    %v867 = vmul.f32 %v837, %v852
    %v868 = vmul.f32 %v838, %v856
    %v869 = vadd.f32 %v861, %v862
    %v870 = vadd.f32 %v869, %v863
    %v871 = vadd.f32 %v870, %v864
    %872 = vadd.xlane.f32.xlu0 %v871
    %v873 = vpop.xlane.xlu0 %872
    %v874 = vadd.f32 %v865, %v866
    %v875 = vadd.f32 %v874, %v867
    %v876 = vadd.f32 %v875, %v868
    %877 = vadd.xlane.f32.xlu0 %v876
    %v878 = vpop.xlane.xlu0 %877
    %s879 = sld [smem:[#allocation2]]
    %v880 = vstv %s879
    %v881 = vadd.f32 %v873, %v880
    %v882 = vadd.f32 %v878, %v880
    %v883 = vxor.u32 %v881, 2147483648
    %v884 = vxor.u32 %v882, 2147483648
    %v885 = vmul.f32 %v883, 1.442695
    %v886 = vpow.pop %v885
    %v887 = vmul.f32 %v884, 1.442695
    %v888 = vpow.pop %v887
    %v889 = vadd.f32 %v886, 1.0
    %v890 = vadd.f32 %v888, 1.0
    %v891 = vrcp.pop %v889
    %v892 = vmul.f32 1.0, %v891
    %v893 = vrcp.pop %v890
    %v894 = vmul.f32 1.0, %v893
    %vm895 = vcmask 7168
    %896 = vst.msk [vmem:[%s7] sm:$0xff] %vm895, %v892
    %897 = vst.msk [vmem:[%s7 + $0x8] sm:$0xff] %vm895, %v894
    // Predicated region
    $region46: #{tpu_custom_call.1} parent=1 // pred_check
      _
    $region47: #{tpu_custom_call.1} parent=1 // pred_check_branch
      %899 = sbr.rel (0) target = $region49
    $region48: #{tpu_custom_call.1} parent=1 // pred_region
      _
    $region49: #{tpu_custom_call.1} parent=1 // pred_fallthru
      _
    // Predicated region
    $region50: #{tpu_custom_call.1} parent=1 // pred_check
      _
    $region51: #{tpu_custom_call.1} parent=1 // pred_check_branch
      %901 = sbr.rel (0) target = $region53
    $region52: #{tpu_custom_call.1} parent=1 // pred_region
      _
    $region53: #{tpu_custom_call.1} parent=1 // pred_fallthru
      _
    %902 = vsyncpa [#allocation4], 1
    %903 = vsyncpa [#allocation6], 1
    %904 = vsyncpa [#allocation9], 1

</llo_original>
